<compile_context>
chip_gen: v6e
topology: v6e:2x2x1
jax: 0.10.0
libtpu: 0.0.40
codegen_flags: <defaults>
</compile_context>

<pallas_src>
import functools

import jax
import jax.numpy as jnp
from jax.experimental import pallas as pl
from jax.experimental.pallas import tpu as pltpu


def _round_up(x, m):
    return ((x + m - 1) // m) * m


def _pick_tile(dim, cap, mult):
    """Largest tile <= cap that divides dim and is a multiple of `mult`;
    falls back to the full dim (always a legal block)."""
    for t in range(max(1, min(cap, dim)), 0, -1):
        if dim % t == 0 and t % mult == 0:
            return t
    return dim


def _default_vmem_limit():
    # Generation-aware VMEM budget (review item 5): ~40 MiB on v7x (64 MiB
    # physical), ~96 MiB on v5e/v6e (128 MiB physical).  Safe fallback if the
    # query is unavailable.
    try:
        cap = getattr(pltpu.get_tpu_info(), "vmem_capacity_bytes", None)
        if cap:
            return int(max(32 << 20, min(cap - (24 << 20), (cap * 3) // 4)))
    except Exception:
        pass
    return 48 << 20


_VMEM_LIMIT = _default_vmem_limit()


# --------------------------------------------------------------------------
# Pallas kernels
# --------------------------------------------------------------------------

def _conv3x3_relu_kernel(x_ref, w_ref, b_ref, o_ref, *, th, wout):
    # x_ref: (1, H+2, Wp+2, Cin) zero-padded image, VMEM-resident across the
    #        row-block grid axis (index_map ignores r -> DMA'd once per image).
    # w_ref: (9, Cin, Cout) tap-major weight, VMEM-resident (constant index).
    # b_ref: (1, Cout) f32 bias.   o_ref: (1, th, Wp, Cout) output row-block.
    # The 9 (dy,dx) taps are streamed straight from the resident image; no
    # im2col patch matrix ever touches HBM (review item 1).
    r0 = pl.multiple_of(pl.program_id(1) * th, th)
    acc = None
    for dy in range(3):
        for dx in range(3):
            tap = x_ref[0, pl.ds(r0 + dy, th), pl.ds(dx, wout), :]
            tap = tap.reshape(th * wout, tap.shape[-1])
            part = jnp.dot(tap, w_ref[dy * 3 + dx],
                           preferred_element_type=jnp.float32)
            acc = part if acc is None else acc + part
    out = jnp.maximum(acc + b_ref[...], 0.0)      # fused bias + ReLU, f32 epilogue
    o_ref[...] = out.reshape(o_ref.shape).astype(o_ref.dtype)


def conv3x3_relu(x, w9, bias):
    """x: (NB, H, W, Cin) bf16; w9: (9, Cin_p, Cout) bf16 (tap-major, prepacked);
    bias: (1, Cout) f32.  Returns relu(conv3x3(x) + bias) in bf16."""
    NB, H, W, Cin = x.shape
    _, cin_p, Cout = w9.shape
    Wp = _round_up(W, 8)                 # sublane-friendly width (no K padding)
    # halo pad (+1 each side) + optional width/channel zero-pad in one XLA op.
    xp = jnp.pad(x, ((0, 0), (1, 1), (1, 1 + Wp - W), (0, cin_p - Cin)))
    # row-block so the matmul M dim per grid step is ~4096 pixels.
    th = _pick_tile(H, max(1, 4096 // Wp), 1)
    grid = (NB, H // th)

    cost = pl.CostEstimate(
        flops=2 * NB * H * Wp * 9 * cin_p * Cout,
        transcendentals=0,
        bytes_accessed=xp.size * 2 + w9.size * 2 + NB * H * Wp * Cout * 2 + Cout * 4)

    # TODO(synk): for very large images (>~384x384 early stages) the whole-image
    # residency can exceed the v7x VMEM budget; tile W as well with a halo DMA.
    out = pl.pallas_call(
        functools.partial(_conv3x3_relu_kernel, th=th, wout=Wp),
        grid=grid,
        in_specs=[
            # whole padded image stays resident across the row-block axis
            pl.BlockSpec((1, H + 2, Wp + 2, cin_p), lambda b, r: (b, 0, 0, 0)),
            # full weight / bias DMA'd once (constant index map) -> VMEM-resident
            pl.BlockSpec((9, cin_p, Cout), lambda b, r: (0, 0, 0)),
            pl.BlockSpec((1, Cout), lambda b, r: (0, 0)),
        ],
        out_specs=pl.BlockSpec((1, th, Wp, Cout), lambda b, r: (b, r, 0, 0)),
        out_shape=jax.ShapeDtypeStruct((NB, H, Wp, Cout), jnp.bfloat16),
        compiler_params=pltpu.CompilerParams(
            dimension_semantics=("parallel", "parallel"),
            vmem_limit_bytes=_VMEM_LIMIT),
        cost_estimate=cost,
    )(xp, w9, bias)
    return out[:, :, :W, :] if Wp != W else out


def _diff_mean_kernel(x_ref, r_ref, o_ref, acc_ref, *, squared, inv_count):
    @pl.when(pl.program_id(0) == 0)
    def _():
        acc_ref[...] = jnp.zeros_like(acc_ref)

    d = x_ref[...] - r_ref[...]
    d = d * d if squared else jnp.abs(d)
    s = jnp.sum(d, axis=1, keepdims=True)              # lane reduce    -> (tr, 1)
    acc_ref[...] += jnp.sum(s, axis=0, keepdims=True)  # sublane reduce -> (1, 1)

    @pl.when(pl.program_id(0) == pl.num_programs(0) - 1)
    def _():
        o_ref[...] = acc_ref[...] * inv_count


def diff_mean(x, r, squared):
    """mean(|x-r|) or mean((x-r)^2).  Contiguous (free) reshape to 2-D, no
    padding copies, grid-tiled streaming reduction, VMEM scalar accumulator."""
    lastdim = x.shape[-1]
    xf = x.reshape(-1, lastdim).astype(jnp.float32)
    rf = r.reshape(-1, lastdim).astype(jnp.float32)
    rows = xf.shape[0]
    total = rows * lastdim
    cap = max(8, (4 << 20) // (lastdim * 4))            # ~4 MiB f32 blocks
    tr = _pick_tile(rows, cap, 8)

    out = pl.pallas_call(
        functools.partial(_diff_mean_kernel, squared=squared,
                          inv_count=1.0 / float(total)),
        grid=(rows // tr,),
        in_specs=[
            pl.BlockSpec((tr, lastdim), lambda i: (i, 0)),
            pl.BlockSpec((tr, lastdim), lambda i: (i, 0)),
        ],
        out_specs=pl.BlockSpec((1, 1), lambda i: (0, 0)),
        out_shape=jax.ShapeDtypeStruct((1, 1), jnp.float32),
        scratch_shapes=[pltpu.VMEM((1, 1), jnp.float32)],
        compiler_params=pltpu.CompilerParams(
            dimension_semantics=("arbitrary",),
            vmem_limit_bytes=_VMEM_LIMIT),
    )(xf, rf)
    return out[0, 0]


def _lpips_layer_kernel(f0_ref, f1_ref, w_ref, o_ref, acc_ref, *, inv_p):
    # f0, f1 tiles: (1, tp, C) bf16; w: (1, 1, C) f32 non-negative lin weights.
    # LPIPS per-layer: unit-normalize over channels, squared diff, weighted
    # channel sum ("lin" 1x1 conv), spatial average accumulated over P tiles.
    @pl.when(pl.program_id(1) == 0)
    def _():
        acc_ref[...] = jnp.zeros_like(acc_ref)

    eps = 1e-10
    f0 = f0_ref[...].astype(jnp.float32)
    f1 = f1_ref[...].astype(jnp.float32)
    inv0 = pl.reciprocal(
        jnp.sqrt(jnp.sum(f0 * f0, axis=-1, keepdims=True)) + eps, approx=True)
    inv1 = pl.reciprocal(
        jnp.sqrt(jnp.sum(f1 * f1, axis=-1, keepdims=True)) + eps, approx=True)
    d = (f0 * inv0 - f1 * inv1) ** 2                  # (1, tp, C)
    r = jnp.sum(d * w_ref[...], axis=-1)              # (1, tp)
    acc_ref[...] += jnp.sum(r, axis=-1, keepdims=True)  # (1, 1)

    @pl.when(pl.program_id(1) == pl.num_programs(1) - 1)
    def _():
        o_ref[...] = acc_ref[...] * inv_p


def lpips_layer_distance(f0, f1, lin_w):
    """f0, f1: (N, P, C) bf16 features; lin_w: (1, 1, C) f32.  Returns (N, 1)."""
    N, P, C = f0.shape
    cap = max(512, (1 << 21) // (C * 2))               # ~2 MiB bf16 feature tiles
    tp = _pick_tile(P, cap, 8)
    return pl.pallas_call(
        functools.partial(_lpips_layer_kernel, inv_p=1.0 / float(P)),
        grid=(N, P // tp),
        in_specs=[
            pl.BlockSpec((1, tp, C), lambda n, p: (n, p, 0)),
            pl.BlockSpec((1, tp, C), lambda n, p: (n, p, 0)),
            pl.BlockSpec((1, 1, C), lambda n, p: (0, 0, 0)),
        ],
        out_specs=pl.BlockSpec((1, 1), lambda n, p: (n, 0)),
        out_shape=jax.ShapeDtypeStruct((N, 1), jnp.float32),
        scratch_shapes=[pltpu.VMEM((1, 1), jnp.float32)],
        compiler_params=pltpu.CompilerParams(
            dimension_semantics=("parallel", "arbitrary"),
            vmem_limit_bytes=_VMEM_LIMIT),
    )(f0, f1, lin_w)


# --------------------------------------------------------------------------
# LPIPS / VGG16 glue (pooling, parameter init/prep)
# --------------------------------------------------------------------------

_VGG_CFG = [(3, 64), (64, 64),
            (64, 128), (128, 128),
            (128, 256), (256, 256), (256, 256),
            (256, 512), (512, 512), (512, 512),
            (512, 512), (512, 512), (512, 512)]
_STAGE_NCONV = (2, 2, 3, 3, 3)           # relu1_2, relu2_2, relu3_3, relu4_3, relu5_3
_LPIPS_CHNS = (64, 128, 256, 512, 512)
_SHIFT = jnp.array([-0.030, -0.088, -0.188], jnp.float32)
_SCALE = jnp.array([0.458, 0.448, 0.450], jnp.float32)


def maxpool2x2(x):
    # TODO(synk): fuse the 2x2 max-pool into the preceding conv's epilogue to
    # save one HBM round-trip of the stage activations; kept as XLA glue.
    N, H, W, C = x.shape
    return x.reshape(N, H // 2, 2, W // 2, 2, C).max(axis=(2, 4))


def vgg16_features(x_nhwc_bf16, prepped_params):
    feats = []
    h = x_nhwc_bf16
    idx = 0
    for si, nconv in enumerate(_STAGE_NCONV):
        if si > 0:
            h = maxpool2x2(h)
        for _ in range(nconv):
            w9, b = prepped_params[idx]
            idx += 1
            h = conv3x3_relu(h, w9, b)
        feats.append(h)
    return feats


def lpips_vgg(x_nchw, recon_nchw, prepped_vgg, lin_ws):
    # Mirrors lpips.LPIPS(net='vgg', version='0.1') forward (normalize=False).
    def scaling_layer(t):
        return (t - _SHIFT[None, :, None, None]) / _SCALE[None, :, None, None]

    # Single VGG pass over [x; recon] (weights stream through HBM once).
    both = jnp.concatenate([x_nchw, recon_nchw], axis=0)
    both = jnp.transpose(scaling_layer(both), (0, 2, 3, 1)).astype(jnp.bfloat16)
    feats = vgg16_features(both, prepped_vgg)

    N = x_nchw.shape[0]
    val = jnp.zeros((N, 1), jnp.float32)
    for f, lw in zip(feats, lin_ws):
        NB, H, W, C = f.shape
        ff = f.reshape(NB, H * W, C)
        val = val + lpips_layer_distance(ff[:N], ff[N:], lw)
    return val  # (N, 1), i.e. LPIPS (N,1,1,1) squeezed


def init_lpips_params(key):
    """Random stand-in for the pretrained VGG16 + LPIPS lin weights (PyTorch layout)."""
    params = []
    for cin, cout in _VGG_CFG:
        key, kw = jax.random.split(key)
        std = (2.0 / (cin * 9)) ** 0.5
        w = jax.random.normal(kw, (cout, cin, 3, 3), jnp.float32) * std
        params.append((w, jnp.zeros((cout,), jnp.float32)))
    lin_ws = []
    for c in _LPIPS_CHNS:
        key, kl = jax.random.split(key)
        lin_ws.append(jnp.abs(jax.random.normal(kl, (1, c), jnp.float32)) / c)
    return params, lin_ws


def prep_lpips_params(vgg_params, lin_ws):
    """One-time repack (hoisted out of the forward): conv weights ->
    (9, Cin_padded_to_8, Cout) bf16 tap-major tensors, biases -> (1, Cout) f32,
    lin weights -> (1, 1, C) f32.  No 27->128 K padding any more."""
    prepped = []
    for w, b in vgg_params:
        cout, cin = w.shape[0], w.shape[1]
        cin_p = _round_up(cin, 8)                       # only pads the first conv 3->8
        w9 = jnp.transpose(w, (2, 3, 1, 0)).reshape(9, cin, cout)
        if cin_p != cin:
            w9 = jnp.pad(w9, ((0, 0), (0, cin_p - cin), (0, 0)))
        prepped.append((w9.astype(jnp.bfloat16),
                        b.reshape(1, cout).astype(jnp.float32)))
    lin_prepped = [lw.reshape(1, 1, -1).astype(jnp.float32) for lw in lin_ws]
    return prepped, lin_prepped


# --------------------------------------------------------------------------
# VQLPIPSLoss.forward
# --------------------------------------------------------------------------

def vq_lpips_loss(quant_loss, x, recon, prepped_vgg, lin_ws, perceptual_weight=1.0):
    """x, recon: PyTorch layout (B, C, H, W) or (B, T, C, H, W), float32."""
    x = x.astype(jnp.float32)
    recon = recon.astype(jnp.float32)

    if perceptual_weight > 0:
        recon_loss = diff_mean(x, recon, squared=False)   # torch.abs(x - recon).mean()
    else:
        recon_loss = diff_mean(x, recon, squared=True)    # F.mse_loss(x, recon)

    if perceptual_weight > 0:
        xl, rl = x, recon
        if x.ndim == 5:                                    # flatten(0, 1)
            xl = x.reshape((-1,) + x.shape[2:])
            rl = recon.reshape((-1,) + recon.shape[2:])
        percept_loss = jnp.mean(lpips_vgg(xl, rl, prepped_vgg, lin_ws))
    else:
        percept_loss = jnp.zeros((), quant_loss.dtype)

    return {
        'quant_loss': quant_loss,
        'recon_loss': recon_loss,
        'percept_loss': percept_loss,
    }


if __name__ == "__main__":
    key = jax.random.PRNGKey(0)
    kx, kr, kq, kp = jax.random.split(key, 4)
    x = jax.random.uniform(kx, (2, 3, 16, 16), jnp.float32, -1.0, 1.0)
    recon = jax.random.uniform(kr, (2, 3, 16, 16), jnp.float32, -1.0, 1.0)
    quant_loss = jax.random.uniform(kq, (), jnp.float32)

    vgg_params, lin_ws = init_lpips_params(kp)
    prepped_vgg, prepped_lin = prep_lpips_params(vgg_params, lin_ws)

    loss_dict = vq_lpips_loss(quant_loss, x, recon, prepped_vgg, prepped_lin,
                              perceptual_weight=1.0)
    jax.block_until_ready(loss_dict)
    print("KERNEL_OK")
</pallas_src>

<mosaic_0001>
module attributes {stable_mosaic.version = 11 : i64} {
  func.func @_diff_mean_kernel(%arg0: i32, %arg1: memref<96x16xf32, #tpu.memory_space<vmem>>, %arg2: memref<96x16xf32, #tpu.memory_space<vmem>>, %arg3: memref<1x1xf32, #tpu.memory_space<vmem>>, %arg4: memref<1x1xf32, #tpu.memory_space<vmem>>) attributes {dimension_semantics = [#tpu.dimension_semantics<arbitrary>], iteration_bounds = array<i64: 1>, scalar_prefetch = 0 : i64, scratch_operands = 1 : i64, tpu.core_type = #tpu.core_type<tc>, window_params = [{transform_indices = @transform_0, window_bounds = array<i64: 96, 16>}, {transform_indices = @transform_1, window_bounds = array<i64: 96, 16>}, {pipeline_mode = #tpu.pipeline_mode<synchronous>, transform_indices = @transform_2, window_bounds = array<i64: 1, 1>}]} {
    %c0_i32 = arith.constant 0 : i32
    %0 = arith.cmpi eq, %arg0, %c0_i32 : i32
    %1 = arith.extui %0 : i1 to i32
    %c0_i32_0 = arith.constant 0 : i32
    %2 = arith.cmpi ne, %1, %c0_i32_0 : i32
    scf.if %2 {
      %cst_11 = arith.constant 0.000000e+00 : f32
      %17 = vector.broadcast %cst_11 : f32 to vector<1x1xf32>
      %c0_12 = arith.constant 0 : index
      %c0_13 = arith.constant 0 : index
      %18 = vector.load %arg4[%c0_12, %c0_13] : memref<1x1xf32, #tpu.memory_space<vmem>>, vector<1x1xf32>
      tpu.vector_store %arg4[%c0_12, %c0_13], %17 {strides = array<i32>} : memref<1x1xf32, #tpu.memory_space<vmem>>, vector<1x1xf32>,
    } else {
    }
    %c0 = arith.constant 0 : index
    %c0_1 = arith.constant 0 : index
    %3 = vector.load %arg1[%c0, %c0_1] : memref<96x16xf32, #tpu.memory_space<vmem>>, vector<96x16xf32>
    %c0_2 = arith.constant 0 : index
    %c0_3 = arith.constant 0 : index
    %4 = vector.load %arg2[%c0_2, %c0_3] : memref<96x16xf32, #tpu.memory_space<vmem>>, vector<96x16xf32>
    %5 = arith.subf %3, %4 : vector<96x16xf32>
    %6 = math.absf %5 : vector<96x16xf32>
    %cst = arith.constant dense<0.000000e+00> : vector<96xf32>
    %7 = vector.multi_reduction <add>, %6, %cst [1] : vector<96x16xf32> to vector<96xf32>
    %8 = vector.shape_cast %7 : vector<96xf32> to vector<96x1xf32>
    %c0_4 = arith.constant 0 : index
    %c0_5 = arith.constant 0 : index
    %9 = vector.load %arg4[%c0_4, %c0_5] : memref<1x1xf32, #tpu.memory_space<vmem>>, vector<1x1xf32>
    %cst_6 = arith.constant dense<0.000000e+00> : vector<1xf32>
    %10 = vector.multi_reduction <add>, %8, %cst_6 [0] : vector<96x1xf32> to vector<1xf32>
    %11 = vector.shape_cast %10 : vector<1xf32> to vector<1x1xf32>
    %12 = arith.addf %9, %11 : vector<1x1xf32>
    %c0_7 = arith.constant 0 : index
    %c0_8 = arith.constant 0 : index
    %13 = vector.load %arg4[%c0_7, %c0_8] : memref<1x1xf32, #tpu.memory_space<vmem>>, vector<1x1xf32>
    tpu.vector_store %arg4[%c0_7, %c0_8], %12 {strides = array<i32>} : memref<1x1xf32, #tpu.memory_space<vmem>>, vector<1x1xf32>,
    %c0_i32_9 = arith.constant 0 : i32
    %14 = arith.cmpi eq, %arg0, %c0_i32_9 : i32
    %15 = arith.extui %14 : i1 to i32
    %c0_i32_10 = arith.constant 0 : i32
    %16 = arith.cmpi ne, %15, %c0_i32_10 : i32
    scf.if %16 {
      %c0_11 = arith.constant 0 : index
      %c0_12 = arith.constant 0 : index
      %17 = vector.load %arg4[%c0_11, %c0_12] : memref<1x1xf32, #tpu.memory_space<vmem>>, vector<1x1xf32>
      %cst_13 = arith.constant 6.51041686E-4 : f32
      %18 = vector.broadcast %cst_13 : f32 to vector<1x1xf32>
      %19 = arith.mulf %17, %18 : vector<1x1xf32>
      %c0_14 = arith.constant 0 : index
      %c0_15 = arith.constant 0 : index
      %20 = vector.load %arg3[%c0_14, %c0_15] : memref<1x1xf32, #tpu.memory_space<vmem>>, vector<1x1xf32>
      tpu.vector_store %arg3[%c0_14, %c0_15], %19 {strides = array<i32>} : memref<1x1xf32, #tpu.memory_space<vmem>>, vector<1x1xf32>,
    } else {
    }
    return
  }
  func.func @transform_0(%arg0: i32) -> (i32, i32) {
    %c0_i32 = arith.constant 0 : i32
    %c0_i32_0 = arith.constant 0 : i32
    return %arg0, %c0_i32 : i32, i32
  }
  func.func @transform_1(%arg0: i32) -> (i32, i32) {
    %c0_i32 = arith.constant 0 : i32
    %c0_i32_0 = arith.constant 0 : i32
    return %arg0, %c0_i32 : i32, i32
  }
  func.func @transform_2(%arg0: i32) -> (i32, i32) {
    %c0_i32 = arith.constant 0 : i32
    %c0_i32_0 = arith.constant 0 : i32
    %c0_i32_1 = arith.constant 0 : i32
    return %c0_i32, %c0_i32_0 : i32, i32
  }
}

</mosaic_0001>

<llo_original>
// kernel: tpu_custom_call.1
$region0: #{tpu_custom_call.1}
  #allocation0 [shape = 'u32[]', space=smem, size = 0x4, offset = 0x4, fixed_abs, tag = 'smem constant byte address 0x4 - core index']
  #allocation1 [shape = 'u32[144,128]{1,0:T(1,128)}', space=vmem, size = 0x12000, scoped, tag = 'internal scratch']
  #allocation2 [shape = 'f32[1,1]{1,0:T(1,128)}', space=vmem, size = 0x200, scoped, tag = 'scratch operand']
  %s0 = inlined_call_operand.vmem [shape: f32[96,16], index: 0, kind: input, shape index: {}]
  %s1 = inlined_call_operand.vmem [shape: f32[96,16], index: 1, kind: input, shape index: {}]
  %s2 = inlined_call_operand.hbm [shape: f32[1,1], index: 2, kind: output, shape index: {}]
  %s3 = sld [smem:[#allocation0]]
  $region26: #{tpu_custom_call.1} parent=0
    _
  %s5 = ssub.s32 1, %s3
  %s6 = scalar_select 0, %s5, %s3
  $region1: #{tpu_custom_call.1} parent=0
    #allocation3 [shape = 'u8[512]{0}', space=vmem, size = 0x400, scoped, tag = 'output window, operand 0, single buffered']
    #allocation4 [shape = 's32[1]{0}', space=sflag, size = 0x4, scoped, tag = 'scoped memory for tpu_custom_call.1']
    %7 = vsyncpa [#allocation4], 0
    // Predicated region
    $region2: #{tpu_custom_call.1} parent=1 // pred_check
      _
    $region3: #{tpu_custom_call.1} parent=1 // pred_check_branch
      %9 = sbr.rel (0) target = $region5
    $region4: #{tpu_custom_call.1} parent=1 // pred_region
      _
    $region5: #{tpu_custom_call.1} parent=1 // pred_fallthru
      _
    // Predicated region
    $region6: #{tpu_custom_call.1} parent=1 // pred_check
      _
    $region7: #{tpu_custom_call.1} parent=1 // pred_check_branch
      %11 = sbr.rel (0) target = $region9
    $region8: #{tpu_custom_call.1} parent=1 // pred_region
      _
    $region9: #{tpu_custom_call.1} parent=1 // pred_fallthru
      _
    %p12 = scmp.eq.s32.totalorder 0, 0
    // Predicated region
    $region10: #{tpu_custom_call.1} parent=1 // pred_check
      %p13 = pneg %p12
    $region11: #{tpu_custom_call.1} parent=1 // pred_check_branch
      %15 = sbr.rel (%p13) target = $region13
    $region12: #{tpu_custom_call.1} parent=1 // pred_region
      %vm16 = vcmask 0
      %17 = vst.msk [vmem:[#allocation2] sm:$0x1] %vm16, 0.0
    $region13: #{tpu_custom_call.1} parent=1 // pred_fallthru
      _
    %v18 = vld [vmem:[%s0] sm:$0xff]
    %v19 = vld [vmem:[%s0 + $0x8] sm:$0xff]
    %v20 = vld [vmem:[%s0 + $0x10] sm:$0xff]
    %v21 = vld [vmem:[%s0 + $0x18] sm:$0xff]
    %v22 = vld [vmem:[%s0 + $0x20] sm:$0xff]
    %v23 = vld [vmem:[%s0 + $0x28] sm:$0xff]
    %v24 = vld [vmem:[%s0 + $0x30] sm:$0xff]
    %v25 = vld [vmem:[%s0 + $0x38] sm:$0xff]
    %v26 = vld [vmem:[%s0 + $0x40] sm:$0xff]
    %v27 = vld [vmem:[%s0 + $0x48] sm:$0xff]
    %v28 = vld [vmem:[%s0 + $0x50] sm:$0xff]
    %v29 = vld [vmem:[%s0 + $0x58] sm:$0xff]
    %v30 = vld [vmem:[%s1] sm:$0xff]
    %v31 = vld [vmem:[%s1 + $0x8] sm:$0xff]
    %v32 = vld [vmem:[%s1 + $0x10] sm:$0xff]
    %v33 = vld [vmem:[%s1 + $0x18] sm:$0xff]
    %v34 = vld [vmem:[%s1 + $0x20] sm:$0xff]
    %v35 = vld [vmem:[%s1 + $0x28] sm:$0xff]
    %v36 = vld [vmem:[%s1 + $0x30] sm:$0xff]
    %v37 = vld [vmem:[%s1 + $0x38] sm:$0xff]
    %v38 = vld [vmem:[%s1 + $0x40] sm:$0xff]
    %v39 = vld [vmem:[%s1 + $0x48] sm:$0xff]
    %v40 = vld [vmem:[%s1 + $0x50] sm:$0xff]
    %v41 = vld [vmem:[%s1 + $0x58] sm:$0xff]
    %v42 = vsub.f32 %v18, %v30
    %v43 = vsub.f32 %v19, %v31
    %v44 = vsub.f32 %v20, %v32
    %v45 = vsub.f32 %v21, %v33
    %v46 = vsub.f32 %v22, %v34
    %v47 = vsub.f32 %v23, %v35
    %v48 = vsub.f32 %v24, %v36
    %v49 = vsub.f32 %v25, %v37
    %v50 = vsub.f32 %v26, %v38
    %v51 = vsub.f32 %v27, %v39
    %v52 = vsub.f32 %v28, %v40
    %v53 = vsub.f32 %v29, %v41
    %v54 = vand.u32 2147483647, %v42
    %v55 = vand.u32 2147483647, %v43
    %v56 = vand.u32 2147483647, %v44
    %v57 = vand.u32 2147483647, %v45
    %v58 = vand.u32 2147483647, %v46
    %v59 = vand.u32 2147483647, %v47
    %v60 = vand.u32 2147483647, %v48
    %v61 = vand.u32 2147483647, %v49
    %v62 = vand.u32 2147483647, %v50
    %v63 = vand.u32 2147483647, %v51
    %v64 = vand.u32 2147483647, %v52
    %v65 = vand.u32 2147483647, %v53
    %vm66 = vcmask 130048
    %v67 = vsel %vm66, %v54, 0.0
    %68 = vadd.xlane.f32.xlu0 %v67
    %v69 = vpop.xlane.xlu0 %68
    %v70 = vsel %vm66, %v55, 0.0
    %71 = vadd.xlane.f32.xlu0 %v70
    %v72 = vpop.xlane.xlu0 %71
    %v73 = vsel %vm66, %v56, 0.0
    %74 = vadd.xlane.f32.xlu0 %v73
    %v75 = vpop.xlane.xlu0 %74
    %v76 = vsel %vm66, %v57, 0.0
    %77 = vadd.xlane.f32.xlu0 %v76
    %v78 = vpop.xlane.xlu0 %77
    %v79 = vsel %vm66, %v58, 0.0
    %80 = vadd.xlane.f32.xlu0 %v79
    %v81 = vpop.xlane.xlu0 %80
    %v82 = vsel %vm66, %v59, 0.0
    %83 = vadd.xlane.f32.xlu0 %v82
    %v84 = vpop.xlane.xlu0 %83
    %v85 = vsel %vm66, %v60, 0.0
    %86 = vadd.xlane.f32.xlu0 %v85
    %v87 = vpop.xlane.xlu0 %86
    %v88 = vsel %vm66, %v61, 0.0
    %89 = vadd.xlane.f32.xlu0 %v88
    %v90 = vpop.xlane.xlu0 %89
    %v91 = vsel %vm66, %v62, 0.0
    %92 = vadd.xlane.f32.xlu0 %v91
    %v93 = vpop.xlane.xlu0 %92
    %v94 = vsel %vm66, %v63, 0.0
    %95 = vadd.xlane.f32.xlu0 %v94
    %v96 = vpop.xlane.xlu0 %95
    %v97 = vsel %vm66, %v64, 0.0
    %98 = vadd.xlane.f32.xlu0 %v97
    %v99 = vpop.xlane.xlu0 %98
    %v100 = vsel %vm66, %v65, 0.0
    %101 = vadd.xlane.f32.xlu0 %v100
    %v102 = vpop.xlane.xlu0 %101
    %v103 = vld [vmem:[#allocation2] sm:$0x1]
    %v104 = vadd.f32 %v69, %v72
    %v105 = vadd.f32 %v104, %v75
    %v106 = vadd.f32 %v105, %v78
    %v107 = vadd.f32 %v106, %v81
    %v108 = vadd.f32 %v107, %v84
    %v109 = vadd.f32 %v108, %v87
    %v110 = vadd.f32 %v109, %v90
    %v111 = vadd.f32 %v110, %v93
    %v112 = vadd.f32 %v111, %v96
    %v113 = vadd.f32 %v112, %v99
    %v114 = vadd.f32 %v113, %v102
    %v115 = vrot.slane %v114, 4
    %v116 = vadd.f32 %v114, %v115
    %v117 = vrot.slane %v116, 2
    %v118 = vadd.f32 %v116, %v117
    %v119 = vrot.slane %v118, 1
    %v120 = vadd.f32 %v118, %v119
    %v121 = vadd.f32 %v103, %v120
    %vm122 = vcmask 0
    %123 = vst.msk [vmem:[#allocation2] sm:$0x1] %vm122, %v121
    // Predicated region
    $region14: #{tpu_custom_call.1} parent=1 // pred_check
      %p124 = pneg %p12
    $region15: #{tpu_custom_call.1} parent=1 // pred_check_branch
      %126 = sbr.rel (%p124) target = $region17
    $region16: #{tpu_custom_call.1} parent=1 // pred_region
      %v127 = vld [vmem:[#allocation2] sm:$0x1]
      %v128 = vmul.f32 %v127, 0.0006510417
      %129 = vst.msk [vmem:[#allocation3] sm:$0x1] %vm122, %v128
    $region17: #{tpu_custom_call.1} parent=1 // pred_fallthru
      _
    // Predicated region
    $region18: #{tpu_custom_call.1} parent=1 // pred_check
      _
    $region19: #{tpu_custom_call.1} parent=1 // pred_check_branch
      %131 = sbr.rel (0) target = $region21
    $region20: #{tpu_custom_call.1} parent=1 // pred_region
      %s133 = ssub.s32 16, 16
      %134 = vsyncadd [#allocation4], %s133
      %s136 = sshll.u32 [#allocation3], 4
      %s137 = int_to_ptr.vmem [resolvable:$true] %s136
      %139 = dma.vmem_to_hbm [thread:$0]  %s137, 16, %s2, [#allocation4]
    $region21: #{tpu_custom_call.1} parent=1 // pred_fallthru
      _
    // Predicated region
    $region22: #{tpu_custom_call.1} parent=1 // pred_check
      _
    $region23: #{tpu_custom_call.1} parent=1 // pred_check_branch
      %141 = sbr.rel (0) target = $region25
    $region24: #{tpu_custom_call.1} parent=1 // pred_region
      %142 = dma.done [#allocation4], 16
    $region25: #{tpu_custom_call.1} parent=1 // pred_fallthru
      _
    %143 = vsyncpa [#allocation4], 1

</llo_original>
